<compile_context>
chip_gen: v7x
topology: tpu7x:2x2x1
jax: 0.10.0
libtpu: 0.0.40
codegen_flags: <defaults>
</compile_context>

<pallas_src>
import functools

import jax
import jax.numpy as jnp
from jax.experimental import pallas as pl
from jax.experimental.pallas import tpu as pltpu


def _round_up(x, m):
    return ((x + m - 1) // m) * m


def qnetwork_kernel(x_ref, w1_ref, w2_ref, w3_ref, b1_ref, b2_ref, b3_ref, o_ref):
    """Fused forward pass for one batch tile: 3 matmuls + 2 ReLUs.

    Layer 1 runs in f32 (tiny K, keeps raw-state fidelity, avoids a wrapper cast pass);
    layers 2/3 use bf16 MXU operands with f32 accumulation.
    """
    # hidden layer 1: relu(x @ W1 + b1)   (f32 x f32 -> f32)
    h = jnp.dot(x_ref[...], w1_ref[...], preferred_element_type=jnp.float32)
    h = jnp.maximum(h + b1_ref[...], 0.0)

    # hidden layer 2: relu(h @ W2 + b2)   (bf16 operands, f32 acc)
    h = jnp.dot(h.astype(jnp.bfloat16), w2_ref[...], preferred_element_type=jnp.float32)
    h = jnp.maximum(h + b2_ref[...], 0.0)

    # output layer (no activation), compact lane padding (action_size -> out_pad lanes)
    out = jnp.dot(h.astype(jnp.bfloat16), w3_ref[...], preferred_element_type=jnp.float32)
    o_ref[...] = (out + b3_ref[...]).astype(o_ref.dtype)


def prepare_qnetwork_params(params):
    """One-time parameter packing (do this OUTSIDE the per-step forward path).

    Pads the output layer to 8 lanes (compact writeback) and casts W2/W3 to bf16.
    """
    w1, b1 = params["W1"], params["b1"]
    w2, b2 = params["W2"], params["b2"]
    w3, b3 = params["W3"], params["b3"]
    h2, action_size = w3.shape
    out_pad = max(8, _round_up(action_size, 8))

    w3_p = jnp.zeros((h2, out_pad), jnp.float32).at[:, :action_size].set(w3)
    b3_p = jnp.zeros((1, out_pad), jnp.float32).at[:, :action_size].set(b3)

    return {
        "w1": w1.astype(jnp.float32),          # (state_size, h1) f32
        "b1": b1.astype(jnp.float32),          # (1, h1)          f32
        "w2": w2.astype(jnp.bfloat16),         # (h1, h2)         bf16
        "b2": b2.astype(jnp.float32),          # (1, h2)          f32
        "w3": w3_p.astype(jnp.bfloat16),       # (h2, out_pad)    bf16 (zero-padded)
        "b3": b3_p,                            # (1, out_pad)     f32  (zero-padded)
    }


def _choose_tile(B, batch_tile):
    """Pick a batch tile: big (amortize grid-step overhead) but megacore-aware on v7x."""
    if B >= 32:
        # Keep at least 2 grid steps so both v7x TensorCores get work.
        half = _round_up((B + 1) // 2, 16)
        tile = min(int(batch_tile), half)
        tile = max(16, _round_up(tile, 16))
    else:
        tile = _round_up(max(B, 8), 8)
    return tile


def qnetwork_forward(x, packed, *, action_size, batch_tile=512):
    """x: [B, state_size] float32.  packed: output of prepare_qnetwork_params()."""
    B, state_size = x.shape
    w1, b1 = packed["w1"], packed["b1"]
    w2, b2 = packed["w2"], packed["b2"]
    w3, b3 = packed["w3"], packed["b3"]
    h1 = w1.shape[1]
    h2 = w2.shape[1]
    out_pad = w3.shape[1]

    tile = _choose_tile(B, batch_tile)
    grid = (pl.cdiv(B, tile),)   # partial last block handled (and write-masked) by Pallas

    whole = lambda shape: pl.BlockSpec(shape, lambda i: (0, 0))

    out_padded = pl.pallas_call(
        qnetwork_kernel,
        out_shape=jax.ShapeDtypeStruct((B, out_pad), jnp.float32),
        grid_spec=pltpu.PrefetchScalarGridSpec(
            num_scalar_prefetch=0,
            grid=grid,
            in_specs=[
                pl.BlockSpec((tile, state_size), lambda i: (i, 0)),  # x tile (f32)
                whole((state_size, h1)),                             # W1 (f32)
                whole((h1, h2)),                                     # W2 (bf16)
                whole((h2, out_pad)),                                # W3 padded (bf16)
                whole((1, h1)),                                      # b1 (f32)
                whole((1, h2)),                                      # b2 (f32)
                whole((1, out_pad)),                                 # b3 padded (f32)
            ],
            out_specs=pl.BlockSpec((tile, out_pad), lambda i: (i, 0)),
        ),
        compiler_params=pltpu.CompilerParams(
            dimension_semantics=("parallel",),
        ),
    )(x, w1, w2, w3, b1, b2, b3)

    return out_padded[:, :action_size]


def init_qnetwork_params(key, state_size, action_size, hidden_layers=(64, 64)):
    """Deterministic init mimicking torch.nn.Linear default: U(-1/sqrt(fan_in), +1/sqrt(fan_in))."""
    sizes = [state_size, *hidden_layers, action_size]
    params = {}
    for idx, (fan_in, fan_out) in enumerate(zip(sizes[:-1], sizes[1:]), start=1):
        key, kw, kb = jax.random.split(key, 3)
        bound = 1.0 / (fan_in ** 0.5)
        params[f"W{idx}"] = jax.random.uniform(
            kw, (fan_in, fan_out), jnp.float32, minval=-bound, maxval=bound)
        params[f"b{idx}"] = jax.random.uniform(
            kb, (1, fan_out), jnp.float32, minval=-bound, maxval=bound)
    return params


def qnetwork_reference(x, params):
    """Pure-JAX f32 reference of the PyTorch forward pass."""
    h = jnp.maximum(x @ params["W1"] + params["b1"], 0.0)
    h = jnp.maximum(h @ params["W2"] + params["b2"], 0.0)
    return h @ params["W3"] + params["b3"]


if __name__ == "__main__":
    STATE_SIZE = 8
    ACTION_SIZE = 4
    HIDDEN = (64, 64)
    BATCH = 64  # -> tile=32, grid=(2,): exercises the megacore-aware multi-step path

    key = jax.random.PRNGKey(0)
    key, kx = jax.random.split(key)
    params = init_qnetwork_params(key, STATE_SIZE, ACTION_SIZE, HIDDEN)
    x = jax.random.normal(kx, (BATCH, STATE_SIZE), jnp.float32)

    # One-time parameter prep (outside the per-step forward / jit).
    packed = prepare_qnetwork_params(params)

    fwd = jax.jit(functools.partial(
        qnetwork_forward, action_size=ACTION_SIZE, batch_tile=512))
    out = fwd(x, packed)
    jax.block_until_ready(out)

    ref = qnetwork_reference(x, params)
    assert out.shape == (BATCH, ACTION_SIZE)
    # Layers 2/3 use bf16 MXU operands with f32 accumulation -> loose tolerance vs f32 ref.
    assert jnp.allclose(out, ref, atol=2e-2, rtol=2e-2), "Pallas output mismatch vs reference"

    print("KERNEL_OK")
</pallas_src>

<mosaic_0001>
module attributes {stable_mosaic.version = 11 : i64} {
  func.func @qnetwork_kernel(%arg0: i32, %arg1: memref<32x8xf32, #tpu.memory_space<vmem>>, %arg2: memref<8x64xf32, #tpu.memory_space<vmem>>, %arg3: memref<64x64xbf16, #tpu.memory_space<vmem>>, %arg4: memref<64x8xbf16, #tpu.memory_space<vmem>>, %arg5: memref<1x64xf32, #tpu.memory_space<vmem>>, %arg6: memref<1x64xf32, #tpu.memory_space<vmem>>, %arg7: memref<1x8xf32, #tpu.memory_space<vmem>>, %arg8: memref<32x8xf32, #tpu.memory_space<vmem>>) attributes {dimension_semantics = [#tpu.dimension_semantics<parallel>], iteration_bounds = array<i64: 2>, scalar_prefetch = 0 : i64, scratch_operands = 0 : i64, tpu.core_type = #tpu.core_type<tc>, window_params = [{transform_indices = @transform_0, window_bounds = array<i64: 32, 8>}, {pipeline_mode = #tpu.pipeline_mode<synchronous>, transform_indices = @transform_1, window_bounds = array<i64: 8, 64>}, {pipeline_mode = #tpu.pipeline_mode<synchronous>, transform_indices = @transform_2, window_bounds = array<i64: 64, 64>}, {pipeline_mode = #tpu.pipeline_mode<synchronous>, transform_indices = @transform_3, window_bounds = array<i64: 64, 8>}, {pipeline_mode = #tpu.pipeline_mode<synchronous>, transform_indices = @transform_4, window_bounds = array<i64: 1, 64>}, {pipeline_mode = #tpu.pipeline_mode<synchronous>, transform_indices = @transform_5, window_bounds = array<i64: 1, 64>}, {pipeline_mode = #tpu.pipeline_mode<synchronous>, transform_indices = @transform_6, window_bounds = array<i64: 1, 8>}, {transform_indices = @transform_7, window_bounds = array<i64: 32, 8>}]} {
    %c0 = arith.constant 0 : index
    %c0_0 = arith.constant 0 : index
    %0 = vector.load %arg1[%c0, %c0_0] : memref<32x8xf32, #tpu.memory_space<vmem>>, vector<32x8xf32>
    %c0_1 = arith.constant 0 : index
    %c0_2 = arith.constant 0 : index
    %1 = vector.load %arg2[%c0_1, %c0_2] : memref<8x64xf32, #tpu.memory_space<vmem>>, vector<8x64xf32>
    %cst = arith.constant dense<0.000000e+00> : vector<32x64xf32>
    %2 = tpu.matmul %0, %1, %cst {dimension_numbers = #tpu.dot_dimension_numbers<[1], [0], [0], [1], [0, 0, 1, 1], [], []>} : vector<32x8xf32>, vector<8x64xf32>, vector<32x64xf32> -> vector<32x64xf32>
    %c0_3 = arith.constant 0 : index
    %c0_4 = arith.constant 0 : index
    %3 = vector.load %arg5[%c0_3, %c0_4] : memref<1x64xf32, #tpu.memory_space<vmem>>, vector<1x64xf32>
    %4 = vector.broadcast %3 : vector<1x64xf32> to vector<32x64xf32>
    %5 = arith.addf %2, %4 : vector<32x64xf32>
    %cst_5 = arith.constant 0.000000e+00 : f32
    %6 = vector.broadcast %cst_5 : f32 to vector<32x64xf32>
    %7 = arith.maximumf %5, %6 : vector<32x64xf32>
    %8 = arith.truncf %7 : vector<32x64xf32> to vector<32x64xbf16>
    %c0_6 = arith.constant 0 : index
    %c0_7 = arith.constant 0 : index
    %9 = vector.load %arg3[%c0_6, %c0_7] : memref<64x64xbf16, #tpu.memory_space<vmem>>, vector<64x64xbf16>
    %cst_8 = arith.constant dense<0.000000e+00> : vector<32x64xf32>
    %10 = tpu.matmul %8, %9, %cst_8 {dimension_numbers = #tpu.dot_dimension_numbers<[1], [0], [0], [1], [0, 0, 1, 1], [], []>} : vector<32x64xbf16>, vector<64x64xbf16>, vector<32x64xf32> -> vector<32x64xf32>
    %c0_9 = arith.constant 0 : index
    %c0_10 = arith.constant 0 : index
    %11 = vector.load %arg6[%c0_9, %c0_10] : memref<1x64xf32, #tpu.memory_space<vmem>>, vector<1x64xf32>
    %12 = vector.broadcast %11 : vector<1x64xf32> to vector<32x64xf32>
    %13 = arith.addf %10, %12 : vector<32x64xf32>
    %cst_11 = arith.constant 0.000000e+00 : f32
    %14 = vector.broadcast %cst_11 : f32 to vector<32x64xf32>
    %15 = arith.maximumf %13, %14 : vector<32x64xf32>
    %16 = arith.truncf %15 : vector<32x64xf32> to vector<32x64xbf16>
    %c0_12 = arith.constant 0 : index
    %c0_13 = arith.constant 0 : index
    %17 = vector.load %arg4[%c0_12, %c0_13] : memref<64x8xbf16, #tpu.memory_space<vmem>>, vector<64x8xbf16>
    %cst_14 = arith.constant dense<0.000000e+00> : vector<32x8xf32>
    %18 = tpu.matmul %16, %17, %cst_14 {dimension_numbers = #tpu.dot_dimension_numbers<[1], [0], [0], [1], [0, 0, 1, 1], [], []>} : vector<32x64xbf16>, vector<64x8xbf16>, vector<32x8xf32> -> vector<32x8xf32>
    %c0_15 = arith.constant 0 : index
    %c0_16 = arith.constant 0 : index
    %19 = vector.load %arg7[%c0_15, %c0_16] : memref<1x8xf32, #tpu.memory_space<vmem>>, vector<1x8xf32>
    %20 = vector.broadcast %19 : vector<1x8xf32> to vector<32x8xf32>
    %21 = arith.addf %18, %20 : vector<32x8xf32>
    %c0_17 = arith.constant 0 : index
    %c0_18 = arith.constant 0 : index
    %22 = vector.load %arg8[%c0_17, %c0_18] : memref<32x8xf32, #tpu.memory_space<vmem>>, vector<32x8xf32>
    tpu.vector_store %arg8[%c0_17, %c0_18], %21 {strides = array<i32>} : memref<32x8xf32, #tpu.memory_space<vmem>>, vector<32x8xf32>,
    return
  }
  func.func @transform_0(%arg0: i32) -> (i32, i32) {
    %c0_i32 = arith.constant 0 : i32
    %c0_i32_0 = arith.constant 0 : i32
    return %arg0, %c0_i32 : i32, i32
  }
  func.func @transform_1(%arg0: i32) -> (i32, i32) {
    %c0_i32 = arith.constant 0 : i32
    %c0_i32_0 = arith.constant 0 : i32
    %c0_i32_1 = arith.constant 0 : i32
    return %c0_i32, %c0_i32_0 : i32, i32
  }
  func.func @transform_2(%arg0: i32) -> (i32, i32) {
    %c0_i32 = arith.constant 0 : i32
    %c0_i32_0 = arith.constant 0 : i32
    %c0_i32_1 = arith.constant 0 : i32
    return %c0_i32, %c0_i32_0 : i32, i32
  }
  func.func @transform_3(%arg0: i32) -> (i32, i32) {
    %c0_i32 = arith.constant 0 : i32
    %c0_i32_0 = arith.constant 0 : i32
    %c0_i32_1 = arith.constant 0 : i32
    return %c0_i32, %c0_i32_0 : i32, i32
  }
  func.func @transform_4(%arg0: i32) -> (i32, i32) {
    %c0_i32 = arith.constant 0 : i32
    %c0_i32_0 = arith.constant 0 : i32
    %c0_i32_1 = arith.constant 0 : i32
    return %c0_i32, %c0_i32_0 : i32, i32
  }
  func.func @transform_5(%arg0: i32) -> (i32, i32) {
    %c0_i32 = arith.constant 0 : i32
    %c0_i32_0 = arith.constant 0 : i32
    %c0_i32_1 = arith.constant 0 : i32
    return %c0_i32, %c0_i32_0 : i32, i32
  }
  func.func @transform_6(%arg0: i32) -> (i32, i32) {
    %c0_i32 = arith.constant 0 : i32
    %c0_i32_0 = arith.constant 0 : i32
    %c0_i32_1 = arith.constant 0 : i32
    return %c0_i32, %c0_i32_0 : i32, i32
  }
  func.func @transform_7(%arg0: i32) -> (i32, i32) {
    %c0_i32 = arith.constant 0 : i32
    %c0_i32_0 = arith.constant 0 : i32
    return %arg0, %c0_i32 : i32, i32
  }
}

</mosaic_0001>

<llo_original>
// kernel: qnetwork_forward.1
$region0: #{qnetwork_forward.1}
  #allocation0 [shape = 'u32[]', space=smem, size = 0x4, offset = 0x4, fixed_abs, tag = 'smem constant byte address 0x4 - core index']
  #allocation1 [shape = 'u32[144,128]{1,0:T(1,128)}', space=vmem, size = 0x12000, scoped, tag = 'internal scratch']
  %s0 = inlined_call_operand.vmem [shape: f32[64,8], index: 0, kind: input, shape index: {}]
  %s1 = inlined_call_operand.vmem [shape: f32[8,64], index: 1, kind: input, shape index: {}]
  %s2 = inlined_call_operand.vmem [shape: bf16[64,64], index: 2, kind: input, shape index: {}]
  %s3 = inlined_call_operand.vmem [shape: bf16[64,8], index: 3, kind: input, shape index: {}]
  %s4 = inlined_call_operand.vmem [shape: f32[1,64], index: 4, kind: input, shape index: {}]
  %s5 = inlined_call_operand.vmem [shape: f32[1,64], index: 5, kind: input, shape index: {}]
  %s6 = inlined_call_operand.vmem [shape: f32[1,8], index: 6, kind: input, shape index: {}]
  %s7 = inlined_call_operand.vmem [shape: f32[64,8], index: 7, kind: output, shape index: {}]
  %s8 = sld [smem:[#allocation0]]
  $region61: #{qnetwork_forward.1} parent=0
    _
  %s10 = ssub.s32 1, %s8
  %s11 = scalar_select 0, %s10, %s8
  loop: start=0, step=1, limit=4
  $region2: #{qnetwork_forward.1} parent=0 // loop_pre_header
    _
  $region3: #{qnetwork_forward.1} parent=0 // loop_header
    %s13 = sphi 0, %s17
    %p14 = scmp.ge.s32.totalorder %s13, 4
    %s23 = sphi 0, %s25
    %s26 = sphi 0, %s23
    %s27 = sphi 0, %s26
    %s43 = sphi 0, %s27
    %s47 = sphi 0, %s47
    %s49 = sphi 0, %s47
    %s50 = sphi 0, %s49
    %s64 = sphi 0, %s50
    %s68 = sphi 0, %s68
    %s70 = sphi 0, %s68
    %s71 = sphi 0, %s70
    %s85 = sphi 0, %s71
    %s89 = sphi 0, %s89
    %s91 = sphi 0, %s89
    %s92 = sphi 0, %s91
    %s106 = sphi 0, %s92
    %s110 = sphi 0, %s110
    %s112 = sphi 0, %s110
    %s113 = sphi 0, %s112
    %s127 = sphi 0, %s113
    %s131 = sphi 0, %s131
    %s133 = sphi 0, %s131
    %s134 = sphi 0, %s133
    %s148 = sphi 0, %s134
    %s152 = sphi 0, %s152
    %s154 = sphi 0, %s152
    %s155 = sphi 0, %s154
    %s169 = sphi 0, %s155
    %s175 = sphi 0, %s177
    %s178 = sphi 0, %s175
    %s179 = sphi 0, %s178
    %s195 = sphi 0, %s179
  $region4: #{qnetwork_forward.1} parent=0 // loop_header_branch
    %16 = sbr.rel (%p14) target = $region8
  $region5: #{qnetwork_forward.1} parent=0 // loop_body
    %s18 = ssub.s32 %s13, 1
    %s19 = ssub.s32 %s13, 2
    %s20 = sadd.s32 %s13, 1
    %s21 = ssub.s32 %s13, %s20
    %p22 = scmp.eq.s32.totalorder %s21, 0
    %s24 = sadd.s32 %s23, 1
    %s25 = scalar_select %p22, %s23, %s24
    %p28 = pneg %p22
    %p29 = scmp.eq.s32.totalorder %s13, 1
    %p30 = por %p28, %p29
    %p31 = scmp.ne.s32.totalorder %s23, %s26
    %p32 = scmp.eq.s32.totalorder %s13, 0
    %p33 = por %p31, %p32
    %p34 = scmp.ne.s32.totalorder %s23, %s26
    %p35 = scmp.eq.s32.totalorder %s18, 1
    %p36 = por %p34, %p35
    %p37 = scmp.ne.s32.totalorder %s26, %s27
    %p38 = scmp.eq.s32.totalorder %s18, 0
    %p39 = por %p37, %p38
    %p40 = scmp.ne.s32.totalorder %s26, %s27
    %p41 = scmp.eq.s32.totalorder %s19, 1
    %p42 = por %p40, %p41
    %p44 = scmp.ne.s32.totalorder %s27, %s43
    %p45 = scmp.eq.s32.totalorder %s19, 0
    %p46 = por %p44, %p45
    %s48 = sadd.s32 %s47, 1
    %p51 = scmp.eq.s32.totalorder %s13, 1
    %p52 = scmp.ne.s32.totalorder %s47, %s49
    %p53 = scmp.eq.s32.totalorder %s13, 0
    %p54 = por %p52, %p53
    %p55 = scmp.ne.s32.totalorder %s47, %s49
    %p56 = scmp.eq.s32.totalorder %s18, 1
    %p57 = por %p55, %p56
    %p58 = scmp.ne.s32.totalorder %s49, %s50
    %p59 = scmp.eq.s32.totalorder %s18, 0
    %p60 = por %p58, %p59
    %p61 = scmp.ne.s32.totalorder %s49, %s50
    %p62 = scmp.eq.s32.totalorder %s19, 1
    %p63 = por %p61, %p62
    %p65 = scmp.ne.s32.totalorder %s50, %s64
    %p66 = scmp.eq.s32.totalorder %s19, 0
    %p67 = por %p65, %p66
    %s69 = sadd.s32 %s68, 1
    %p72 = scmp.eq.s32.totalorder %s13, 1
    %p73 = scmp.ne.s32.totalorder %s68, %s70
    %p74 = scmp.eq.s32.totalorder %s13, 0
    %p75 = por %p73, %p74
    %p76 = scmp.ne.s32.totalorder %s68, %s70
    %p77 = scmp.eq.s32.totalorder %s18, 1
    %p78 = por %p76, %p77
    %p79 = scmp.ne.s32.totalorder %s70, %s71
    %p80 = scmp.eq.s32.totalorder %s18, 0
    %p81 = por %p79, %p80
    %p82 = scmp.ne.s32.totalorder %s70, %s71
    %p83 = scmp.eq.s32.totalorder %s19, 1
    %p84 = por %p82, %p83
    %p86 = scmp.ne.s32.totalorder %s71, %s85
    %p87 = scmp.eq.s32.totalorder %s19, 0
    %p88 = por %p86, %p87
    %s90 = sadd.s32 %s89, 1
    %p93 = scmp.eq.s32.totalorder %s13, 1
    %p94 = scmp.ne.s32.totalorder %s89, %s91
    %p95 = scmp.eq.s32.totalorder %s13, 0
    %p96 = por %p94, %p95
    %p97 = scmp.ne.s32.totalorder %s89, %s91
    %p98 = scmp.eq.s32.totalorder %s18, 1
    %p99 = por %p97, %p98
    %p100 = scmp.ne.s32.totalorder %s91, %s92
    %p101 = scmp.eq.s32.totalorder %s18, 0
    %p102 = por %p100, %p101
    %p103 = scmp.ne.s32.totalorder %s91, %s92
    %p104 = scmp.eq.s32.totalorder %s19, 1
    %p105 = por %p103, %p104
    %p107 = scmp.ne.s32.totalorder %s92, %s106
    %p108 = scmp.eq.s32.totalorder %s19, 0
    %p109 = por %p107, %p108
    %s111 = sadd.s32 %s110, 1
    %p114 = scmp.eq.s32.totalorder %s13, 1
    %p115 = scmp.ne.s32.totalorder %s110, %s112
    %p116 = scmp.eq.s32.totalorder %s13, 0
    %p117 = por %p115, %p116
    %p118 = scmp.ne.s32.totalorder %s110, %s112
    %p119 = scmp.eq.s32.totalorder %s18, 1
    %p120 = por %p118, %p119
    %p121 = scmp.ne.s32.totalorder %s112, %s113
    %p122 = scmp.eq.s32.totalorder %s18, 0
    %p123 = por %p121, %p122
    %p124 = scmp.ne.s32.totalorder %s112, %s113
    %p125 = scmp.eq.s32.totalorder %s19, 1
    %p126 = por %p124, %p125
    %p128 = scmp.ne.s32.totalorder %s113, %s127
    %p129 = scmp.eq.s32.totalorder %s19, 0
    %p130 = por %p128, %p129
    %s132 = sadd.s32 %s131, 1
    %p135 = scmp.eq.s32.totalorder %s13, 1
    %p136 = scmp.ne.s32.totalorder %s131, %s133
    %p137 = scmp.eq.s32.totalorder %s13, 0
    %p138 = por %p136, %p137
    %p139 = scmp.ne.s32.totalorder %s131, %s133
    %p140 = scmp.eq.s32.totalorder %s18, 1
    %p141 = por %p139, %p140
    %p142 = scmp.ne.s32.totalorder %s133, %s134
    %p143 = scmp.eq.s32.totalorder %s18, 0
    %p144 = por %p142, %p143
    %p145 = scmp.ne.s32.totalorder %s133, %s134
    %p146 = scmp.eq.s32.totalorder %s19, 1
    %p147 = por %p145, %p146
    %p149 = scmp.ne.s32.totalorder %s134, %s148
    %p150 = scmp.eq.s32.totalorder %s19, 0
    %p151 = por %p149, %p150
    %s153 = sadd.s32 %s152, 1
    %p156 = scmp.eq.s32.totalorder %s13, 1
    %p157 = scmp.ne.s32.totalorder %s152, %s154
    %p158 = scmp.eq.s32.totalorder %s13, 0
    %p159 = por %p157, %p158
    %p160 = scmp.ne.s32.totalorder %s152, %s154
    %p161 = scmp.eq.s32.totalorder %s18, 1
    %p162 = por %p160, %p161
    %p163 = scmp.ne.s32.totalorder %s154, %s155
    %p164 = scmp.eq.s32.totalorder %s18, 0
    %p165 = por %p163, %p164
    %p166 = scmp.ne.s32.totalorder %s154, %s155
    %p167 = scmp.eq.s32.totalorder %s19, 1
    %p168 = por %p166, %p167
    %p170 = scmp.ne.s32.totalorder %s155, %s169
    %p171 = scmp.eq.s32.totalorder %s19, 0
    %p172 = por %p170, %p171
    %s173 = ssub.s32 %s13, %s20
    %p174 = scmp.eq.s32.totalorder %s173, 0
    %s176 = sadd.s32 %s175, 1
    %s177 = scalar_select %p174, %s175, %s176
    %p180 = pneg %p174
    %p181 = scmp.eq.s32.totalorder %s13, 1
    %p182 = por %p180, %p181
    %p183 = scmp.ne.s32.totalorder %s175, %s178
    %p184 = scmp.eq.s32.totalorder %s13, 0
    %p185 = por %p183, %p184
    %p186 = scmp.ne.s32.totalorder %s175, %s178
    %p187 = scmp.eq.s32.totalorder %s18, 1
    %p188 = por %p186, %p187
    %p189 = scmp.ne.s32.totalorder %s178, %s179
    %p190 = scmp.eq.s32.totalorder %s18, 0
    %p191 = por %p189, %p190
    %p192 = scmp.ne.s32.totalorder %s178, %s179
    %p193 = scmp.eq.s32.totalorder %s19, 1
    %p194 = por %p192, %p193
    %p196 = scmp.ne.s32.totalorder %s179, %s195
    %p197 = scmp.eq.s32.totalorder %s19, 0
    %p198 = por %p196, %p197
    %p199 = scmp.le.s32.totalorder 1, %s13
    %p200 = scmp.lt.s32.totalorder %s13, 3
    %p201 = pnand %p199, %p200
    %p202 = pneg %p201
    // Predicated region
    $region9: #{qnetwork_forward.1} parent=5 // pred_check
      _
    $region10: #{qnetwork_forward.1} parent=5 // pred_check_branch
      %204 = sbr.rel (%p201) target = $region12
    $region11: #{qnetwork_forward.1} parent=5 // pred_region
      %s205 = ssub.s32 %s13, 1
      // Predicated region
      $region13: #{qnetwork_forward.1} parent=11 // pred_check
        %p206 = pneg %p60
      $region14: #{qnetwork_forward.1} parent=11 // pred_check_branch
        %208 = sbr.rel (%p206) target = $region16
      $region15: #{qnetwork_forward.1} parent=11 // pred_region
        _
      $region16: #{qnetwork_forward.1} parent=11 // pred_fallthru
        _
      // Predicated region
      $region17: #{qnetwork_forward.1} parent=11 // pred_check
        %p209 = pneg %p81
      $region18: #{qnetwork_forward.1} parent=11 // pred_check_branch
        %211 = sbr.rel (%p209) target = $region20
      $region19: #{qnetwork_forward.1} parent=11 // pred_region
        _
      $region20: #{qnetwork_forward.1} parent=11 // pred_fallthru
        _
      // Predicated region
      $region21: #{qnetwork_forward.1} parent=11 // pred_check
        %p212 = pneg %p102
      $region22: #{qnetwork_forward.1} parent=11 // pred_check_branch
        %214 = sbr.rel (%p212) target = $region24
      $region23: #{qnetwork_forward.1} parent=11 // pred_region
        _
      $region24: #{qnetwork_forward.1} parent=11 // pred_fallthru
        _
      // Predicated region
      $region25: #{qnetwork_forward.1} parent=11 // pred_check
        %p215 = pneg %p123
      $region26: #{qnetwork_forward.1} parent=11 // pred_check_branch
        %217 = sbr.rel (%p215) target = $region28
      $region27: #{qnetwork_forward.1} parent=11 // pred_region
        _
      $region28: #{qnetwork_forward.1} parent=11 // pred_fallthru
        _
      // Predicated region
      $region29: #{qnetwork_forward.1} parent=11 // pred_check
        %p218 = pneg %p144
      $region30: #{qnetwork_forward.1} parent=11 // pred_check_branch
        %220 = sbr.rel (%p218) target = $region32
      $region31: #{qnetwork_forward.1} parent=11 // pred_region
        _
      $region32: #{qnetwork_forward.1} parent=11 // pred_fallthru
        _
      // Predicated region
      $region33: #{qnetwork_forward.1} parent=11 // pred_check
        %p221 = pneg %p165
      $region34: #{qnetwork_forward.1} parent=11 // pred_check_branch
        %223 = sbr.rel (%p221) target = $region36
      $region35: #{qnetwork_forward.1} parent=11 // pred_region
        _
      $region36: #{qnetwork_forward.1} parent=11 // pred_fallthru
        _
    $region12: #{qnetwork_forward.1} parent=5 // pred_fallthru
      _
    %p224 = scmp.lt.s32.totalorder %s13, 2
    // Predicated region
    $region37: #{qnetwork_forward.1} parent=5 // pred_check
      %p225 = pneg %p224
    $region38: #{qnetwork_forward.1} parent=5 // pred_check_branch
      %227 = sbr.rel (%p225) target = $region40
    $region39: #{qnetwork_forward.1} parent=5 // pred_region
      // Predicated region
      $region41: #{qnetwork_forward.1} parent=39 // pred_check
        %p228 = pneg %p33
      $region42: #{qnetwork_forward.1} parent=39 // pred_check_branch
        %230 = sbr.rel (%p228) target = $region44
      $region43: #{qnetwork_forward.1} parent=39 // pred_region
        %s231 = smul.u32 4, %s13
        %p232 = scmp.lt.s32.totalorder %s231, 7
        %s233 = scalar_select %p232, %s231, 7
        %s234 = smul.addr %s233, 8
        %s235 = scalar_lea.vmem %s0, %s234
        %s236 = smul.u32 4, %s13
      $region44: #{qnetwork_forward.1} parent=39 // pred_fallthru
        _
    $region40: #{qnetwork_forward.1} parent=5 // pred_fallthru
      _
    %p237 = scmp.le.s32.totalorder 1, %s13
    %p238 = scmp.lt.s32.totalorder %s13, 3
    %p239 = pnand %p237, %p238
    %p240 = pneg %p239
    // Predicated region
    $region45: #{qnetwork_forward.1} parent=5 // pred_check
      _
    $region46: #{qnetwork_forward.1} parent=5 // pred_check_branch
      %242 = sbr.rel (%p239) target = $region48
    $region47: #{qnetwork_forward.1} parent=5 // pred_region
      %s243 = ssub.s32 %s13, 1
      %s244 = smul.u32 4, %s18
      %p245 = scmp.lt.s32.totalorder %s244, 7
      %s246 = scalar_select %p245, %s244, 7
      %s247 = smul.addr %s246, 8
      %s248 = scalar_lea.vmem %s0, %s247
      %p249 = pneg %p39
      %p250 = pneg %p36
      %p251 = pneg %p60
      %p252 = pneg %p57
      %p253 = pneg %p81
      %p254 = pneg %p78
      %p255 = pneg %p102
      %p256 = pneg %p99
      %p257 = pneg %p123
      %p258 = pneg %p120
      %p259 = pneg %p144
      %p260 = pneg %p141
      %p261 = pneg %p165
      %p262 = pneg %p162
      %p263 = pneg %p191
      %p264 = pneg %p188
      %s265 = smul.u32 4, %s18
      %p266 = scmp.lt.s32.totalorder %s265, 7
      %s267 = scalar_select %p266, %s265, 7
      %s268 = smul.addr %s267, 8
      %s269 = scalar_lea.vmem %s7, %s268
      %s270 = smul.u32 4, %s18
      %p271 = scmp.lt.s32.totalorder %s270, 7
      %s272 = scalar_select %p271, %s270, 7
      %s273 = smul.addr %s272, 8
      %s274 = scalar_lea.vmem %s0, %s273
      %s275 = smul.u32 4, %s18
      %s276 = smul.u32 4, %s18
      %p277 = scmp.lt.s32.totalorder %s276, 7
      %s278 = scalar_select %p277, %s276, 7
      %s279 = smul.addr %s278, 8
      %s280 = scalar_lea.vmem %s7, %s279
      %s281 = smul.u32 4, %s18
      %v283 = vld [vmem:[%s274] sm:$0xff]
      %v284 = vld [vmem:[%s274 + $0x8] sm:$0xff]
      %v285 = vld [vmem:[%s274 + $0x10] sm:$0xff]
      %v286 = vld [vmem:[%s274 + $0x18] sm:$0xff]
      %v287 = vld [vmem:[%s1] sm:$0xff]
      %v288 = vld [vmem:[%s4] sm:$0x1]
      %v290 = vlaneseq
      %v291 = vshrl.u32 %v290, 7
      %v292 = vsub.s32 0, %v291
      %v293 = vrot.slane %v288, %v292
      %vm295 = vcmask 64512
      %v297 = vsel %vm295, %v283, 0
      %v300 = vsel %vm295, %v284, 0
      %v303 = vsel %vm295, %v285, 0
      %v306 = vsel %vm295, %v286, 0
      %308 = vmatprep.subr.mxu0 0.0
      %309 = vmatpush1.msra.mxu0 %v287
      %310 = vmatprep.subr.mxu0 0.0
      %311 = vmatpush1.msra.mxu0 0.0
      %312 = vmatprep.subr.mxu0 0.0
      %313 = vmatpush1.msra.mxu0 0.0
      %314 = vmatprep.subr.mxu0 0.0
      %315 = vmatpush1.msra.mxu0 0.0
      %316 = vmatprep.subr.mxu0 0.0
      %317 = vmatpush1.msra.mxu0 0.0
      %318 = vmatprep.subr.mxu0 0.0
      %319 = vmatpush1.msra.mxu0 0.0
      %320 = vmatprep.subr.mxu0 0.0
      %321 = vmatpush1.msra.mxu0 0.0
      %322 = vmatprep.subr.mxu0 0.0
      %323 = vmatpush1.msra.mxu0 0.0
      %324 = vmatprep.subr.mxu0 0.0
      %325 = vmatpush1.msra.mxu0 0.0
      %326 = vmatprep.subr.mxu0 0.0
      %327 = vmatpush1.msra.mxu0 0.0
      %328 = vmatprep.subr.mxu0 0.0
      %329 = vmatpush1.msra.mxu0 0.0
      %330 = vmatprep.subr.mxu0 0.0
      %331 = vmatpush1.msra.mxu0 0.0
      %332 = vmatprep.subr.mxu0 0.0
      %333 = vmatpush1.msra.mxu0 0.0
      %334 = vmatprep.subr.mxu0 0.0
      %335 = vmatpush1.msra.mxu0 0.0
      %336 = vmatprep.subr.mxu0 0.0
      %337 = vmatpush1.msra.mxu0 0.0
      %338 = vmatprep.subr.mxu0 0.0
      %339 = vmatpush1.msra.mxu0 0.0
      %340 = vmatprep.subr.mxu0 0.0
      %341 = vmatpush1.msra.mxu0 0.0
      %342 = vmatprep.subr.mxu0 0.0
      %343 = vmatpush1.msra.mxu0 0.0
      %344 = vmatprep.subr.mxu0 0.0
      %345 = vmatpush1.msra.mxu0 0.0
      %346 = vmatprep.subr.mxu0 0.0
      %347 = vmatpush1.msra.mxu0 0.0
      %348 = vmatprep.subr.mxu0 0.0
      %349 = vmatpush1.msra.mxu0 0.0
      %350 = vmatprep.subr.mxu0 0.0
      %351 = vmatpush1.msra.mxu0 0.0
      %352 = vmatprep.subr.mxu0 0.0
      %353 = vmatpush1.msra.mxu0 0.0
      %354 = vmatprep.subr.mxu0 0.0
      %355 = vmatpush1.msra.mxu0 0.0
      %356 = vmatprep.subr.mxu0 0.0
      %357 = vmatpush1.msra.mxu0 0.0
      %358 = vmatprep.subr.mxu0 0.0
      %359 = vmatpush1.msra.mxu0 0.0
      %360 = vmatprep.subr.mxu0 0.0
      %361 = vmatpush1.msra.mxu0 0.0
      %362 = vmatprep.subr.mxu0 0.0
      %363 = vmatpush1.msra.mxu0 0.0
      %364 = vmatprep.subr.mxu0 0.0
      %365 = vmatpush1.msra.mxu0 0.0
      %366 = vmatprep.subr.mxu0 0.0
      %367 = vmatpush1.msra.mxu0 0.0
      %368 = vmatprep.subr.mxu0 0.0
      %369 = vmatpush1.msra.mxu0 0.0
      %370 = vmatprep.subr.mxu0 0.0
      %371 = vmatpush1.msra.mxu0 0.0
      %372 = vmatprep.mubr.f32.mxu0 0.0
      %373 = vmatmul.mubr.f32.gmra.mrb[0].mxu0 %v297
      %v374 = vpop.f32.mrb[0].mxu0
      %v375 = vadd.f32 %v293, %v374
      %v376 = vpop.f32.mrb[0].mxu0
      %377 = vmatprep.mubr.f32.mxu0 0.0
      %378 = vmatmul.mubr.f32.gmra.mrb[0].mxu0 %v300
      %v379 = vpop.f32.mrb[0].mxu0
      %v380 = vadd.f32 %v293, %v379
      %v381 = vpop.f32.mrb[0].mxu0
      %382 = vmatprep.mubr.f32.mxu0 0.0
      %383 = vmatmul.mubr.f32.gmra.mrb[0].mxu0 %v303
      %v384 = vpop.f32.mrb[0].mxu0
      %v385 = vadd.f32 %v293, %v384
      %v386 = vpop.f32.mrb[0].mxu0
      %387 = vmatprep.mubr.f32.mxu0 0.0
      %388 = vmatmul.mubr.f32.gmra.mrb[0].mxu0 %v306
      %v389 = vpop.f32.mrb[0].mxu0
      %v390 = vadd.f32 %v293, %v389
      %v391 = vpop.f32.mrb[0].mxu0
      %392 = vdwg.mxu0
      %v393 = vmax.f32 %v375, 0.0
      %v394 = vmax.f32 %v380, 0.0
      %v395 = vmax.f32 %v385, 0.0
      %v396 = vmax.f32 %v390, 0.0
      %v397 = vpack.c.bf16 %v394, %v393
      %v398 = vpack.c.bf16 %v396, %v395
      %v399 = vld [vmem:[%s2] sm:$0xf]
      %v400 = vld [vmem:[%s2 + $0x4] sm:$0xf]
      %v401 = vld [vmem:[%s2 + $0x8] sm:$0xf]
      %v402 = vld [vmem:[%s2 + $0xc] sm:$0xf]
      %v403 = vld [vmem:[%s2 + $0x10] sm:$0xf]
      %v404 = vld [vmem:[%s2 + $0x14] sm:$0xf]
      %v405 = vld [vmem:[%s2 + $0x18] sm:$0xf]
      %v406 = vld [vmem:[%s2 + $0x1c] sm:$0xf]
      %v407 = vld [vmem:[%s5] sm:$0x1]
      %v409 = vlaneseq
      %v410 = vshrl.u32 %v409, 7
      %v411 = vsub.s32 0, %v410
      %v412 = vrot.slane %v407, %v411
      %v422 = vunpack.c.l.b16 %v399
      %v423 = vunpack.c.l.b16 %v400
      %v424 = vunpack.c.l.b16 %v401
      %v425 = vunpack.c.l.b16 %v402
      %v426 = vunpack.c.l.b16 %v403
      %v427 = vunpack.c.l.b16 %v404
      %v428 = vunpack.c.l.b16 %v405
      %v429 = vunpack.c.l.b16 %v406
      %v430 = vpack.c.b16 %v423, %v422
      %v431 = vpack.c.b16 %v425, %v424
      %v432 = vpack.c.b16 %v427, %v426
      %v433 = vpack.c.b16 %v429, %v428
      %vm438 = vcmask 523264
      %v440 = vsel %vm438, %v397, 0
      %v443 = vsel %vm438, %v398, 0
      %445 = vmatprep.subr.bf16.mxu0 0
      %446 = vmatpush1.bf16.msra.mxu0 %v430
      %447 = vmatprep.subr.bf16.mxu0 0
      %448 = vmatpush1.bf16.msra.mxu0 %v431
      %449 = vmatprep.subr.bf16.mxu0 0
      %450 = vmatpush1.bf16.msra.mxu0 %v432
      %451 = vmatprep.subr.bf16.mxu0 0
      %452 = vmatpush1.bf16.msra.mxu0 %v433
      %453 = vmatprep.subr.bf16.mxu0 0
      %454 = vmatpush1.bf16.msra.mxu0 0
      %455 = vmatprep.subr.bf16.mxu0 0
      %456 = vmatpush1.bf16.msra.mxu0 0
      %457 = vmatprep.subr.bf16.mxu0 0
      %458 = vmatpush1.bf16.msra.mxu0 0
      %459 = vmatprep.subr.bf16.mxu0 0
      %460 = vmatpush1.bf16.msra.mxu0 0
      %461 = vmatprep.subr.bf16.mxu0 0
      %462 = vmatpush1.bf16.msra.mxu0 0
      %463 = vmatprep.subr.bf16.mxu0 0
      %464 = vmatpush1.bf16.msra.mxu0 0
      %465 = vmatprep.subr.bf16.mxu0 0
      %466 = vmatpush1.bf16.msra.mxu0 0
      %467 = vmatprep.subr.bf16.mxu0 0
      %468 = vmatpush1.bf16.msra.mxu0 0
      %469 = vmatprep.subr.bf16.mxu0 0
      %470 = vmatpush1.bf16.msra.mxu0 0
      %471 = vmatprep.subr.bf16.mxu0 0
      %472 = vmatpush1.bf16.msra.mxu0 0
      %473 = vmatprep.subr.bf16.mxu0 0
      %474 = vmatpush1.bf16.msra.mxu0 0
      %475 = vmatprep.subr.bf16.mxu0 0
      %476 = vmatpush1.bf16.msra.mxu0 0
      %477 = vmatprep.mubr.bf16.mxu0 0
      %478 = vmatmul.mubr.bf16.gmra.mrb[0].mxu0 %v440
      %v479 = vpop.f32.mrb[0].mxu0
      %v480 = vadd.f32 %v412, %v479
      %v481 = vpop.f32.mrb[0].mxu0
      %v482 = vpop.f32.mrb[0].mxu0
      %v483 = vadd.f32 %v412, %v482
      %v484 = vpop.f32.mrb[0].mxu0
      %485 = vmatprep.mubr.bf16.mxu0 0
      %486 = vmatmul.mubr.bf16.gmra.mrb[0].mxu0 %v443
      %v487 = vpop.f32.mrb[0].mxu0
      %v488 = vadd.f32 %v412, %v487
      %v489 = vpop.f32.mrb[0].mxu0
      %v490 = vpop.f32.mrb[0].mxu0
      %v491 = vadd.f32 %v412, %v490
      %v492 = vpop.f32.mrb[0].mxu0
      %493 = vdwg.mxu0
      %v494 = vmax.f32 %v480, 0.0
      %v495 = vmax.f32 %v483, 0.0
      %v496 = vmax.f32 %v488, 0.0
      %v497 = vmax.f32 %v491, 0.0
      %v498 = vpack.c.bf16 %v495, %v494
      %v499 = vpack.c.bf16 %v497, %v496
      %v500 = vld [vmem:[%s3] sm:$0xf]
      %v501 = vld [vmem:[%s3 + $0x4] sm:$0xf]
      %v502 = vld [vmem:[%s3 + $0x8] sm:$0xf]
      %v503 = vld [vmem:[%s3 + $0xc] sm:$0xf]
      %v504 = vld [vmem:[%s3 + $0x10] sm:$0xf]
      %v505 = vld [vmem:[%s3 + $0x14] sm:$0xf]
      %v506 = vld [vmem:[%s3 + $0x18] sm:$0xf]
      %v507 = vld [vmem:[%s3 + $0x1c] sm:$0xf]
      %v508 = vld [vmem:[%s6] sm:$0x1]
      %v510 = vlaneseq
      %v511 = vshrl.u32 %v510, 7
      %v512 = vsub.s32 0, %v511
      %v513 = vrot.slane %v508, %v512
      %v523 = vunpack.c.l.b16 %v500
      %v524 = vunpack.c.l.b16 %v501
      %v525 = vunpack.c.l.b16 %v502
      %v526 = vunpack.c.l.b16 %v503
      %v527 = vunpack.c.l.b16 %v504
      %v528 = vunpack.c.l.b16 %v505
      %v529 = vunpack.c.l.b16 %v506
      %v530 = vunpack.c.l.b16 %v507
      %v531 = vpack.c.b16 %v524, %v523
      %v532 = vpack.c.b16 %v526, %v525
      %v533 = vpack.c.b16 %v528, %v527
      %v534 = vpack.c.b16 %v530, %v529
      %v540 = vsel %vm438, %v498, 0
      %v543 = vsel %vm438, %v499, 0
      %545 = vmatprep.subr.bf16.mxu0 0
      %546 = vmatpush1.bf16.msra.mxu0 %v531
      %547 = vmatprep.subr.bf16.mxu0 0
      %548 = vmatpush1.bf16.msra.mxu0 %v532
      %549 = vmatprep.subr.bf16.mxu0 0
      %550 = vmatpush1.bf16.msra.mxu0 %v533
      %551 = vmatprep.subr.bf16.mxu0 0
      %552 = vmatpush1.bf16.msra.mxu0 %v534
      %553 = vmatprep.subr.bf16.mxu0 0
      %554 = vmatpush1.bf16.msra.mxu0 0
      %555 = vmatprep.subr.bf16.mxu0 0
      %556 = vmatpush1.bf16.msra.mxu0 0
      %557 = vmatprep.subr.bf16.mxu0 0
      %558 = vmatpush1.bf16.msra.mxu0 0
      %559 = vmatprep.subr.bf16.mxu0 0
      %560 = vmatpush1.bf16.msra.mxu0 0
      %561 = vmatprep.subr.bf16.mxu0 0
      %562 = vmatpush1.bf16.msra.mxu0 0
      %563 = vmatprep.subr.bf16.mxu0 0
      %564 = vmatpush1.bf16.msra.mxu0 0
      %565 = vmatprep.subr.bf16.mxu0 0
      %566 = vmatpush1.bf16.msra.mxu0 0
      %567 = vmatprep.subr.bf16.mxu0 0
      %568 = vmatpush1.bf16.msra.mxu0 0
      %569 = vmatprep.subr.bf16.mxu0 0
      %570 = vmatpush1.bf16.msra.mxu0 0
      %571 = vmatprep.subr.bf16.mxu0 0
      %572 = vmatpush1.bf16.msra.mxu0 0
      %573 = vmatprep.subr.bf16.mxu0 0
      %574 = vmatpush1.bf16.msra.mxu0 0
      %575 = vmatprep.subr.bf16.mxu0 0
      %576 = vmatpush1.bf16.msra.mxu0 0
      %577 = vmatprep.mubr.bf16.mxu0 0
      %578 = vmatmul.mubr.bf16.gmra.mrb[0].mxu0 %v540
      %v579 = vpop.f32.mrb[0].mxu0
      %v580 = vadd.f32 %v513, %v579
      %v581 = vpop.f32.mrb[0].mxu0
      %v582 = vpop.f32.mrb[0].mxu0
      %v583 = vadd.f32 %v513, %v582
      %v584 = vpop.f32.mrb[0].mxu0
      %585 = vmatprep.mubr.bf16.mxu0 0
      %586 = vmatmul.mubr.bf16.gmra.mrb[0].mxu0 %v543
      %v587 = vpop.f32.mrb[0].mxu0
      %v588 = vadd.f32 %v513, %v587
      %v589 = vpop.f32.mrb[0].mxu0
      %v590 = vpop.f32.mrb[0].mxu0
      %v591 = vadd.f32 %v513, %v590
      %v592 = vpop.f32.mrb[0].mxu0
      %593 = vdwg.mxu0
      %594 = vst.msk [vmem:[%s280] sm:$0xff] %vm295, %v580
      %595 = vst.msk [vmem:[%s280 + $0x8] sm:$0xff] %vm295, %v583
      %596 = vst.msk [vmem:[%s280 + $0x10] sm:$0xff] %vm295, %v588
      %597 = vst.msk [vmem:[%s280 + $0x18] sm:$0xff] %vm295, %v591
      %s598 = smul.u32 4, %s18
      %p599 = scmp.lt.s32.totalorder %s598, 7
      %s600 = scalar_select %p599, %s598, 7
      %s601 = smul.addr %s600, 8
      %s602 = scalar_lea.vmem %s7, %s601
      // Predicated region
      $region49: #{qnetwork_forward.1} parent=47 // pred_check
        %p603 = pneg %p188
      $region50: #{qnetwork_forward.1} parent=47 // pred_check_branch
        %605 = sbr.rel (%p603) target = $region52
      $region51: #{qnetwork_forward.1} parent=47 // pred_region
        %s606 = smul.u32 4, %s18
      $region52: #{qnetwork_forward.1} parent=47 // pred_fallthru
        _
    $region48: #{qnetwork_forward.1} parent=5 // pred_fallthru
      _
    %p607 = scmp.le.s32.totalorder 2, %s13
    // Predicated region
    $region53: #{qnetwork_forward.1} parent=5 // pred_check
      %p608 = pneg %p607
    $region54: #{qnetwork_forward.1} parent=5 // pred_check_branch
      %610 = sbr.rel (%p608) target = $region56
    $region55: #{qnetwork_forward.1} parent=5 // pred_region
      %s611 = ssub.s32 %s13, 2
      // Predicated region
      $region57: #{qnetwork_forward.1} parent=55 // pred_check
        %p612 = pneg %p194
      $region58: #{qnetwork_forward.1} parent=55 // pred_check_branch
        %614 = sbr.rel (%p612) target = $region60
      $region59: #{qnetwork_forward.1} parent=55 // pred_region
        %s615 = smul.u32 4, %s19
        %p616 = scmp.lt.s32.totalorder %s615, 7
        %s617 = scalar_select %p616, %s615, 7
        %s618 = smul.addr %s617, 8
        %s619 = scalar_lea.vmem %s7, %s618
      $region60: #{qnetwork_forward.1} parent=55 // pred_fallthru
        _
    $region56: #{qnetwork_forward.1} parent=5 // pred_fallthru
      _
  $region6: #{qnetwork_forward.1} parent=0 // loop_footer
    %s17 = sadd.s32 1, %s13
  $region7: #{qnetwork_forward.1} parent=0 // loop_footer_branch
    %12 = sbr.rel target = $region3
  $region8: #{qnetwork_forward.1} parent=0 // loop_exit
    _

</llo_original>
